<compile_context>
chip_gen: v7x
topology: tpu7x:2x2x1
jax: 0.10.0
libtpu: 0.0.40
codegen_flags: <defaults>
</compile_context>

<pallas_src>
import functools

import jax
import jax.numpy as jnp
from jax import lax
from jax.experimental import pallas as pl
from jax.experimental.pallas import tpu as pltpu


def _round_up(x, m):
    return ((x + m - 1) // m) * m


def _conv_bn_act_kernel(x_ref, w_ref, sb_ref, out_ref, *, K, tile_L, apply_silu):
    # x_ref : (1, 1, C_in, W = tile_L + K - 1)   bf16  (windowed input slab)
    # w_ref : (K, C_out_pad, C_in)               bf16
    # sb_ref: (2, C_out_pad, 1)                  f32   ([scale; bias] columns)
    # out_ref: (1, C_out_pad, tile_L)            f32
    c_out = out_ref.shape[1]
    xw = x_ref[0, 0, :, :]                                  # (C_in, W)

    acc = jnp.zeros((c_out, tile_L), jnp.float32)
    for k in range(K):                                      # static unroll
        # Static lane-shifted view of the slab; K small MXU dots, f32 accum.
        acc = acc + jnp.dot(w_ref[k, :, :], xw[:, k:k + tile_L],
                            preferred_element_type=jnp.float32)

    # Folded conv-bias + eval-mode BatchNorm (per-channel scale/bias columns
    # broadcast along the lane axis).
    y = acc * sb_ref[0, :, :] + sb_ref[1, :, :]

    if apply_silu:
        # SiLU: y * sigmoid(y); reciprocal goes to the (otherwise idle) EUP.
        y = y * pl.reciprocal(1.0 + jnp.exp(-y), approx=True)

    out_ref[0, :, :] = y


def basic_conv_forward(x, conv_w, conv_b, bn_gamma, bn_beta, bn_mean, bn_var,
                       *, stride=1, padding=0, eps=1e-5, silu=True,
                       tile_L=512, mxu_dtype=jnp.bfloat16):
    """Fused Conv1d + BatchNorm1d(eval) + SiLU.

    x: [N, C_in, L] (NCL, same as PyTorch).  Returns [N, C_out, L_out] f32.
    """
    N, C_in, L = x.shape
    C_out, _, K = conv_w.shape
    assert stride == 1, "V2SDCBAM's BasicConv only uses stride=1"
    L_out = L + 2 * padding - K + 1
    assert L_out > 0

    # ---- tiling over the length axis (lane axis of the kernel) ----
    tile_L = min(tile_L, _round_up(L_out, 128))      # multiple of 128 lanes
    num_tiles = pl.cdiv(L_out, tile_L)
    L_out_pad = num_tiles * tile_L
    W = tile_L + K - 1                                # slab width incl. halo

    # ---- build overlapping windows directly from x (single gather pass) ----
    # x_win[n, j, c, t] = x_padded[n, c, j*tile_L + t], zero outside [0, L).
    starts = jnp.arange(num_tiles) * tile_L
    pos = starts[:, None] + jnp.arange(W)[None, :] - padding      # [num_tiles, W]
    valid = (pos >= 0) & (pos < L)
    idx = jnp.clip(pos, 0, L - 1)
    x_win = jnp.take(x, idx, axis=2)                              # [N, C_in, nt, W]
    x_win = jnp.where(valid[None, None, :, :], x_win, 0.0)
    x_win = jnp.transpose(x_win, (0, 2, 1, 3)).astype(mxu_dtype)  # [N, nt, C_in, W]

    # ---- weights: (C_out, C_in, K) -> (K, C_out_pad, C_in), bf16 MXU feed ----
    C_out_pad = _round_up(C_out, 8)
    w_t = jnp.transpose(conv_w, (2, 0, 1)).astype(mxu_dtype)      # [K, C_out, C_in]
    if C_out_pad != C_out:
        w_t = jnp.pad(w_t, ((0, 0), (0, C_out_pad - C_out), (0, 0)))

    # ---- fold conv bias + eval-mode BatchNorm into per-channel scale/bias ----
    inv_std = 1.0 / jnp.sqrt(bn_var.astype(jnp.float32) + eps)
    scale = bn_gamma.astype(jnp.float32) * inv_std
    bias = bn_beta.astype(jnp.float32) + (
        conv_b.astype(jnp.float32) - bn_mean.astype(jnp.float32)) * scale
    if C_out_pad != C_out:
        scale = jnp.pad(scale, (0, C_out_pad - C_out))
        bias = jnp.pad(bias, (0, C_out_pad - C_out))
    sb = jnp.stack([scale, bias], axis=0).reshape(2, C_out_pad, 1)

    kernel = functools.partial(_conv_bn_act_kernel,
                               K=K, tile_L=tile_L, apply_silu=silu)

    bytes_el = jnp.dtype(mxu_dtype).itemsize
    cost = pl.CostEstimate(
        flops=2 * N * L_out * C_out * C_in * K,
        transcendentals=(N * L_out * C_out) if silu else 0,
        bytes_accessed=(N * num_tiles * C_in * W * bytes_el
                        + K * C_out_pad * C_in * bytes_el
                        + 2 * C_out_pad * 4
                        + N * C_out_pad * L_out_pad * 4),
    )

    out = pl.pallas_call(
        kernel,
        out_shape=jax.ShapeDtypeStruct((N, C_out_pad, L_out_pad), jnp.float32),
        grid=(N, num_tiles),
        in_specs=[
            pl.BlockSpec((1, 1, C_in, W), lambda n, j: (n, j, 0, 0)),
            pl.BlockSpec((K, C_out_pad, C_in), lambda n, j: (0, 0, 0)),
            pl.BlockSpec((2, C_out_pad, 1), lambda n, j: (0, 0, 0)),
        ],
        out_specs=pl.BlockSpec((1, C_out_pad, tile_L), lambda n, j: (n, 0, j)),
        compiler_params=pltpu.CompilerParams(
            dimension_semantics=("parallel", "parallel")),
        cost_estimate=cost,
    )(x_win, w_t, sb)

    return out[:, :C_out, :L_out]


if __name__ == "__main__":
    key = jax.random.PRNGKey(0)

    def make_params(k, c_in, c_out, ksize):
        ks = jax.random.split(k, 6)
        w = jax.random.normal(ks[0], (c_out, c_in, ksize), jnp.float32) * 0.1
        b = jax.random.normal(ks[1], (c_out,), jnp.float32) * 0.1
        g = 1.0 + 0.1 * jax.random.normal(ks[2], (c_out,), jnp.float32)
        be = 0.1 * jax.random.normal(ks[3], (c_out,), jnp.float32)
        m = 0.1 * jax.random.normal(ks[4], (c_out,), jnp.float32)
        v = jax.random.uniform(ks[5], (c_out,), jnp.float32, minval=0.5, maxval=1.5)
        return w, b, g, be, m, v

    def reference(x, w, b, g, be, m, v, stride, padding, silu, quantize=True):
        if quantize:  # same bf16 rounding of the MXU operands as the kernel
            xr = x.astype(jnp.bfloat16).astype(jnp.float32)
            wr = w.astype(jnp.bfloat16).astype(jnp.float32)
        else:
            xr, wr = x, w
        y = lax.conv_general_dilated(xr, wr, (stride,), [(padding, padding)],
                                     dimension_numbers=("NCH", "OIH", "NCH"))
        y = y + b[None, :, None]
        y = (y - m[None, :, None]) / jnp.sqrt(v[None, :, None] + 1e-5) \
            * g[None, :, None] + be[None, :, None]
        if silu:
            y = y * jax.nn.sigmoid(y)
        return y

    kA, kB, kx1, kx2 = jax.random.split(key, 4)

    # Config A: generic BasicConv(4 -> 8, kernel_size=3, padding=1)
    xA = jax.random.normal(kx1, (2, 4, 160), jnp.float32)
    pA = make_params(kA, 4, 8, 3)
    outA = basic_conv_forward(xA, *pA, stride=1, padding=1, silu=True)
    jax.block_until_ready(outA)
    refA = reference(xA, *pA, 1, 1, True)
    refA_f32 = reference(xA, *pA, 1, 1, True, quantize=False)
    assert outA.shape == (2, 8, 160)
    assert jnp.allclose(outA, refA, atol=5e-3, rtol=5e-3)
    assert jnp.allclose(outA, refA_f32, atol=5e-2, rtol=5e-2)

    # Config B: the exact SpatialGate conv in V2SDCBAM:
    #   BasicConv(2, 1, kernel_size=15, stride=1, padding=7, silu=True)
    xB = jax.random.normal(kx2, (2, 2, 256), jnp.float32)
    pB = make_params(kB, 2, 1, 15)
    outB = basic_conv_forward(xB, *pB, stride=1, padding=7, silu=True)
    jax.block_until_ready(outB)
    refB = reference(xB, *pB, 1, 7, True)
    assert outB.shape == (2, 1, 256)
    assert jnp.allclose(outB, refB, atol=5e-3, rtol=5e-3)

    print("KERNEL_OK")
</pallas_src>

<mosaic_0001>
module attributes {stable_mosaic.version = 11 : i64} {
  func.func @_conv_bn_act_kernel(%arg0: i32, %arg1: i32, %arg2: memref<1x1x4x258xbf16, #tpu.memory_space<vmem>>, %arg3: memref<3x8x4xbf16, #tpu.memory_space<vmem>>, %arg4: memref<2x8x1xf32, #tpu.memory_space<vmem>>, %arg5: memref<1x8x256xf32, #tpu.memory_space<vmem>>) attributes {dimension_semantics = [#tpu.dimension_semantics<parallel>, #tpu.dimension_semantics<parallel>], iteration_bounds = array<i64: 2, 1>, scalar_prefetch = 0 : i64, scratch_operands = 0 : i64, tpu.core_type = #tpu.core_type<tc>, window_params = [{transform_indices = @transform_0, window_bounds = array<i64: 1, 1, 4, 258>}, {pipeline_mode = #tpu.pipeline_mode<synchronous>, transform_indices = @transform_1, window_bounds = array<i64: 3, 8, 4>}, {pipeline_mode = #tpu.pipeline_mode<synchronous>, transform_indices = @transform_2, window_bounds = array<i64: 2, 8, 1>}, {transform_indices = @transform_3, window_bounds = array<i64: 1, 8, 256>}]} {
    %c0 = arith.constant 0 : index
    %c0_0 = arith.constant 0 : index
    %c0_1 = arith.constant 0 : index
    %c0_2 = arith.constant 0 : index
    %0 = vector.load %arg2[%c0, %c0_0, %c0_1, %c0_2] : memref<1x1x4x258xbf16, #tpu.memory_space<vmem>>, vector<1x1x4x258xbf16>
    %1 = vector.shape_cast %0 : vector<1x1x4x258xbf16> to vector<4x258xbf16>
    %cst = arith.constant 0.000000e+00 : f32
    %2 = vector.broadcast %cst : f32 to vector<8x256xf32>
    %c0_3 = arith.constant 0 : index
    %c0_4 = arith.constant 0 : index
    %c0_5 = arith.constant 0 : index
    %3 = vector.load %arg3[%c0_3, %c0_4, %c0_5] : memref<3x8x4xbf16, #tpu.memory_space<vmem>>, vector<1x8x4xbf16>
    %4 = vector.shape_cast %3 : vector<1x8x4xbf16> to vector<8x4xbf16>
    %5 = vector.extract_strided_slice %1 {offsets = [0, 0], sizes = [4, 256], strides = [1, 1]} : vector<4x258xbf16> to vector<4x256xbf16>
    %cst_6 = arith.constant dense<0.000000e+00> : vector<8x256xf32>
    %6 = tpu.matmul %4, %5, %cst_6 {dimension_numbers = #tpu.dot_dimension_numbers<[1], [0], [0], [1], [0, 0, 1, 1], [], []>} : vector<8x4xbf16>, vector<4x256xbf16>, vector<8x256xf32> -> vector<8x256xf32>
    %7 = arith.addf %2, %6 : vector<8x256xf32>
    %c1 = arith.constant 1 : index
    %c0_7 = arith.constant 0 : index
    %c0_8 = arith.constant 0 : index
    %8 = vector.load %arg3[%c1, %c0_7, %c0_8] : memref<3x8x4xbf16, #tpu.memory_space<vmem>>, vector<1x8x4xbf16>
    %9 = vector.shape_cast %8 : vector<1x8x4xbf16> to vector<8x4xbf16>
    %10 = vector.extract_strided_slice %1 {offsets = [0, 1], sizes = [4, 256], strides = [1, 1]} : vector<4x258xbf16> to vector<4x256xbf16>
    %cst_9 = arith.constant dense<0.000000e+00> : vector<8x256xf32>
    %11 = tpu.matmul %9, %10, %cst_9 {dimension_numbers = #tpu.dot_dimension_numbers<[1], [0], [0], [1], [0, 0, 1, 1], [], []>} : vector<8x4xbf16>, vector<4x256xbf16>, vector<8x256xf32> -> vector<8x256xf32>
    %12 = arith.addf %7, %11 : vector<8x256xf32>
    %c2 = arith.constant 2 : index
    %c0_10 = arith.constant 0 : index
    %c0_11 = arith.constant 0 : index
    %13 = vector.load %arg3[%c2, %c0_10, %c0_11] : memref<3x8x4xbf16, #tpu.memory_space<vmem>>, vector<1x8x4xbf16>
    %14 = vector.shape_cast %13 : vector<1x8x4xbf16> to vector<8x4xbf16>
    %15 = vector.extract_strided_slice %1 {offsets = [0, 2], sizes = [4, 256], strides = [1, 1]} : vector<4x258xbf16> to vector<4x256xbf16>
    %cst_12 = arith.constant dense<0.000000e+00> : vector<8x256xf32>
    %16 = tpu.matmul %14, %15, %cst_12 {dimension_numbers = #tpu.dot_dimension_numbers<[1], [0], [0], [1], [0, 0, 1, 1], [], []>} : vector<8x4xbf16>, vector<4x256xbf16>, vector<8x256xf32> -> vector<8x256xf32>
    %17 = arith.addf %12, %16 : vector<8x256xf32>
    %c0_13 = arith.constant 0 : index
    %c0_14 = arith.constant 0 : index
    %c0_15 = arith.constant 0 : index
    %18 = vector.load %arg4[%c0_13, %c0_14, %c0_15] : memref<2x8x1xf32, #tpu.memory_space<vmem>>, vector<1x8x1xf32>
    %19 = vector.shape_cast %18 : vector<1x8x1xf32> to vector<8x1xf32>
    %20 = vector.broadcast %19 : vector<8x1xf32> to vector<8x256xf32>
    %21 = arith.mulf %17, %20 : vector<8x256xf32>
    %c1_16 = arith.constant 1 : index
    %c0_17 = arith.constant 0 : index
    %c0_18 = arith.constant 0 : index
    %22 = vector.load %arg4[%c1_16, %c0_17, %c0_18] : memref<2x8x1xf32, #tpu.memory_space<vmem>>, vector<1x8x1xf32>
    %23 = vector.shape_cast %22 : vector<1x8x1xf32> to vector<8x1xf32>
    %24 = vector.broadcast %23 : vector<8x1xf32> to vector<8x256xf32>
    %25 = arith.addf %21, %24 : vector<8x256xf32>
    %cst_19 = arith.constant 0.000000e+00 : f32
    %26 = vector.broadcast %cst_19 : f32 to vector<8x256xf32>
    %27 = arith.subf %26, %25 : vector<8x256xf32>
    %28 = math.exp %27 : vector<8x256xf32>
    %cst_20 = arith.constant 1.000000e+00 : f32
    %29 = vector.broadcast %cst_20 : f32 to vector<8x256xf32>
    %30 = arith.addf %29, %28 : vector<8x256xf32>
    %31 = tpu.reciprocal %30 {approx = true} : vector<8x256xf32> -> vector<8x256xf32>
    %32 = arith.mulf %25, %31 : vector<8x256xf32>
    %c0_21 = arith.constant 0 : index
    %c0_22 = arith.constant 0 : index
    %c0_23 = arith.constant 0 : index
    %33 = vector.load %arg5[%c0_21, %c0_22, %c0_23] : memref<1x8x256xf32, #tpu.memory_space<vmem>>, vector<1x8x256xf32>
    %34 = vector.shape_cast %33 : vector<1x8x256xf32> to vector<8x256xf32>
    %35 = vector.shape_cast %32 : vector<8x256xf32> to vector<1x8x256xf32>
    tpu.vector_store %arg5[%c0_21, %c0_22, %c0_23], %35 {strides = array<i32>} : memref<1x8x256xf32, #tpu.memory_space<vmem>>, vector<1x8x256xf32>,
    return
  }
  func.func @transform_0(%arg0: i32, %arg1: i32) -> (i32, i32, i32, i32) {
    %c0_i32 = arith.constant 0 : i32
    %c0_i32_0 = arith.constant 0 : i32
    %c0_i32_1 = arith.constant 0 : i32
    return %arg0, %arg1, %c0_i32, %c0_i32_0 : i32, i32, i32, i32
  }
  func.func @transform_1(%arg0: i32, %arg1: i32) -> (i32, i32, i32) {
    %c0_i32 = arith.constant 0 : i32
    %c0_i32_0 = arith.constant 0 : i32
    %c0_i32_1 = arith.constant 0 : i32
    %c0_i32_2 = arith.constant 0 : i32
    return %c0_i32, %c0_i32_0, %c0_i32_1 : i32, i32, i32
  }
  func.func @transform_2(%arg0: i32, %arg1: i32) -> (i32, i32, i32) {
    %c0_i32 = arith.constant 0 : i32
    %c0_i32_0 = arith.constant 0 : i32
    %c0_i32_1 = arith.constant 0 : i32
    %c0_i32_2 = arith.constant 0 : i32
    return %c0_i32, %c0_i32_0, %c0_i32_1 : i32, i32, i32
  }
  func.func @transform_3(%arg0: i32, %arg1: i32) -> (i32, i32, i32) {
    %c0_i32 = arith.constant 0 : i32
    %c0_i32_0 = arith.constant 0 : i32
    return %arg0, %c0_i32, %arg1 : i32, i32, i32
  }
}

</mosaic_0001>

<llo_original>
// kernel: tpu_custom_call.1
$region0: #{tpu_custom_call.1}
  #allocation0 [shape = 'u32[]', space=smem, size = 0x4, offset = 0x4, fixed_abs, tag = 'smem constant byte address 0x4 - core index']
  #allocation1 [shape = 'u32[144,128]{1,0:T(1,128)}', space=vmem, size = 0x12000, scoped, tag = 'internal scratch']
  %s0 = inlined_call_operand.vmem [shape: bf16[2,1,4,258], index: 0, kind: input, shape index: {}]
  %s1 = inlined_call_operand.vmem [shape: bf16[3,8,4], index: 1, kind: input, shape index: {}]
  %s2 = inlined_call_operand.vmem [shape: f32[2,8,1], index: 2, kind: input, shape index: {}]
  %s3 = inlined_call_operand.hbm [shape: f32[2,8,256], index: 3, kind: output, shape index: {}]
  %s4 = sld [smem:[#allocation0]]
  $region45: #{tpu_custom_call.1} parent=0
    _
  %s6 = ssub.s32 1, %s4
  %s7 = scalar_select 0, %s6, %s4
  $region1: #{tpu_custom_call.1} parent=0
    #allocation2 [shape = 'u8[16384]{0}', space=vmem, size = 0x4000, scoped, tag = 'output window, operand 0']
    #allocation3 [shape = 's32[2]{0}', space=sflag, size = 0x8, scoped, tag = 'scoped memory for tpu_custom_call.1']
    %8 = vsyncpa [#allocation3], 0
    %s9 = scalar_lea.sflag [#allocation3], 1
    %10 = vsyncpa %s9, 0
    loop: start=0, step=1, limit=4
    $region2: #{tpu_custom_call.1} parent=1 // loop_pre_header
      _
    $region3: #{tpu_custom_call.1} parent=1 // loop_header
      %s12 = sphi 0, %s16
      %p13 = scmp.ge.s32.totalorder %s12, 4
      %s19 = sphi 0, %s31
      %s20 = sphi 0, %s27
      %s21 = sphi 0, %s19
      %s22 = sphi 0, %s20
      %s23 = sphi 0, %s21
      %s24 = sphi 0, %s22
      %s36 = sphi 0, %s38
      %s39 = sphi 0, %s36
      %s40 = sphi 0, %s39
      %s56 = sphi 0, %s40
      %s60 = sphi 0, %s60
      %s62 = sphi 0, %s60
      %s63 = sphi 0, %s62
      %s77 = sphi 0, %s63
      %s81 = sphi 0, %s81
      %s83 = sphi 0, %s81
      %s84 = sphi 0, %s83
      %s98 = sphi 0, %s84
      %s106 = sphi 0, %s108
      %s109 = sphi 0, %s106
      %s110 = sphi 0, %s109
      %s126 = sphi 0, %s110
    $region4: #{tpu_custom_call.1} parent=1 // loop_header_branch
      %15 = sbr.rel (%p13) target = $region8
    $region5: #{tpu_custom_call.1} parent=1 // loop_body
      %s17 = ssub.s32 %s12, 1
      %s18 = ssub.s32 %s12, 2
      %s25 = sadd.s32 1, %s20
      %p26 = scmp.ge.s32.totalorder %s25, 1
      %s27 = scalar_select %p26, 0, %s25
      %s28 = sadd.s32 1, %s19
      %s29 = scalar_select %p26, %s28, %s19
      %p30 = scmp.ge.s32.totalorder %s29, 2
      %s31 = scalar_select %p30, 0, %s29
      %s32 = ssub.s32 %s19, %s31
      %s33 = ssub.s32 %s20, %s27
      %s34 = sor.u32 %s32, %s33
      %p35 = scmp.eq.s32.totalorder %s34, 0
      %s37 = sadd.s32 %s36, 1
      %s38 = scalar_select %p35, %s36, %s37
      %p41 = pneg %p35
      %p42 = scmp.eq.s32.totalorder %s12, 1
      %p43 = por %p41, %p42
      %p44 = scmp.ne.s32.totalorder %s36, %s39
      %p45 = scmp.eq.s32.totalorder %s12, 0
      %p46 = por %p44, %p45
      %p47 = scmp.ne.s32.totalorder %s36, %s39
      %p48 = scmp.eq.s32.totalorder %s17, 1
      %p49 = por %p47, %p48
      %p50 = scmp.ne.s32.totalorder %s39, %s40
      %p51 = scmp.eq.s32.totalorder %s17, 0
      %p52 = por %p50, %p51
      %p53 = scmp.ne.s32.totalorder %s39, %s40
      %p54 = scmp.eq.s32.totalorder %s18, 1
      %p55 = por %p53, %p54
      %p57 = scmp.ne.s32.totalorder %s40, %s56
      %p58 = scmp.eq.s32.totalorder %s18, 0
      %p59 = por %p57, %p58
      %s61 = sadd.s32 %s60, 1
      %p64 = scmp.eq.s32.totalorder %s12, 1
      %p65 = scmp.ne.s32.totalorder %s60, %s62
      %p66 = scmp.eq.s32.totalorder %s12, 0
      %p67 = por %p65, %p66
      %p68 = scmp.ne.s32.totalorder %s60, %s62
      %p69 = scmp.eq.s32.totalorder %s17, 1
      %p70 = por %p68, %p69
      %p71 = scmp.ne.s32.totalorder %s62, %s63
      %p72 = scmp.eq.s32.totalorder %s17, 0
      %p73 = por %p71, %p72
      %p74 = scmp.ne.s32.totalorder %s62, %s63
      %p75 = scmp.eq.s32.totalorder %s18, 1
      %p76 = por %p74, %p75
      %p78 = scmp.ne.s32.totalorder %s63, %s77
      %p79 = scmp.eq.s32.totalorder %s18, 0
      %p80 = por %p78, %p79
      %s82 = sadd.s32 %s81, 1
      %p85 = scmp.eq.s32.totalorder %s12, 1
      %p86 = scmp.ne.s32.totalorder %s81, %s83
      %p87 = scmp.eq.s32.totalorder %s12, 0
      %p88 = por %p86, %p87
      %p89 = scmp.ne.s32.totalorder %s81, %s83
      %p90 = scmp.eq.s32.totalorder %s17, 1
      %p91 = por %p89, %p90
      %p92 = scmp.ne.s32.totalorder %s83, %s84
      %p93 = scmp.eq.s32.totalorder %s17, 0
      %p94 = por %p92, %p93
      %p95 = scmp.ne.s32.totalorder %s83, %s84
      %p96 = scmp.eq.s32.totalorder %s18, 1
      %p97 = por %p95, %p96
      %p99 = scmp.ne.s32.totalorder %s84, %s98
      %p100 = scmp.eq.s32.totalorder %s18, 0
      %p101 = por %p99, %p100
      %s102 = ssub.s32 %s19, %s31
      %s103 = ssub.s32 %s20, %s27
      %s104 = sor.u32 %s102, %s103
      %p105 = scmp.eq.s32.totalorder %s104, 0
      %s107 = sadd.s32 %s106, 1
      %s108 = scalar_select %p105, %s106, %s107
      %p111 = pneg %p105
      %p112 = scmp.eq.s32.totalorder %s12, 1
      %p113 = por %p111, %p112
      %p114 = scmp.ne.s32.totalorder %s106, %s109
      %p115 = scmp.eq.s32.totalorder %s12, 0
      %p116 = por %p114, %p115
      %p117 = scmp.ne.s32.totalorder %s106, %s109
      %p118 = scmp.eq.s32.totalorder %s17, 1
      %p119 = por %p117, %p118
      %p120 = scmp.ne.s32.totalorder %s109, %s110
      %p121 = scmp.eq.s32.totalorder %s17, 0
      %p122 = por %p120, %p121
      %p123 = scmp.ne.s32.totalorder %s109, %s110
      %p124 = scmp.eq.s32.totalorder %s18, 1
      %p125 = por %p123, %p124
      %p127 = scmp.ne.s32.totalorder %s110, %s126
      %p128 = scmp.eq.s32.totalorder %s18, 0
      %p129 = por %p127, %p128
      %p130 = scmp.le.s32.totalorder 1, %s12
      %p131 = scmp.lt.s32.totalorder %s12, 3
      %p132 = pnand %p130, %p131
      %p133 = pneg %p132
      // Predicated region
      $region9: #{tpu_custom_call.1} parent=5 // pred_check
        _
      $region10: #{tpu_custom_call.1} parent=5 // pred_check_branch
        %135 = sbr.rel (%p132) target = $region12
      $region11: #{tpu_custom_call.1} parent=5 // pred_region
        %s136 = ssub.s32 %s12, 1
        // Predicated region
        $region13: #{tpu_custom_call.1} parent=11 // pred_check
          %p137 = pneg %p73
        $region14: #{tpu_custom_call.1} parent=11 // pred_check_branch
          %139 = sbr.rel (%p137) target = $region16
        $region15: #{tpu_custom_call.1} parent=11 // pred_region
          _
        $region16: #{tpu_custom_call.1} parent=11 // pred_fallthru
          _
        // Predicated region
        $region17: #{tpu_custom_call.1} parent=11 // pred_check
          %p140 = pneg %p94
        $region18: #{tpu_custom_call.1} parent=11 // pred_check_branch
          %142 = sbr.rel (%p140) target = $region20
        $region19: #{tpu_custom_call.1} parent=11 // pred_region
          _
        $region20: #{tpu_custom_call.1} parent=11 // pred_fallthru
          _
      $region12: #{tpu_custom_call.1} parent=5 // pred_fallthru
        _
      %p143 = scmp.lt.s32.totalorder %s12, 2
      // Predicated region
      $region21: #{tpu_custom_call.1} parent=5 // pred_check
        %p144 = pneg %p143
      $region22: #{tpu_custom_call.1} parent=5 // pred_check_branch
        %146 = sbr.rel (%p144) target = $region24
      $region23: #{tpu_custom_call.1} parent=5 // pred_region
        // Predicated region
        $region25: #{tpu_custom_call.1} parent=23 // pred_check
          %p147 = pneg %p46
        $region26: #{tpu_custom_call.1} parent=23 // pred_check_branch
          %149 = sbr.rel (%p147) target = $region28
        $region27: #{tpu_custom_call.1} parent=23 // pred_region
          %p150 = scmp.lt.s32.totalorder %s19, 1
          %s151 = scalar_select %p150, %s19, 1
          %p152 = scmp.lt.s32.totalorder %s20, 0
          %s153 = scalar_select %p152, %s20, 0
          %s154 = smul.addr %s153, 3
          %s155 = smul.addr %s151, 3
          %s156 = sadd.s32 %s154, %s155
          %s157 = smul.addr %s156, 2
          %s158 = scalar_lea.vmem %s0, %s157
        $region28: #{tpu_custom_call.1} parent=23 // pred_fallthru
          _
      $region24: #{tpu_custom_call.1} parent=5 // pred_fallthru
        _
      %p159 = scmp.le.s32.totalorder 1, %s12
      %p160 = scmp.lt.s32.totalorder %s12, 3
      %p161 = pnand %p159, %p160
      %p162 = pneg %p161
      // Predicated region
      $region29: #{tpu_custom_call.1} parent=5 // pred_check
        _
      $region30: #{tpu_custom_call.1} parent=5 // pred_check_branch
        %164 = sbr.rel (%p161) target = $region32
      $region31: #{tpu_custom_call.1} parent=5 // pred_region
        %s165 = ssub.s32 %s12, 1
        %p166 = scmp.lt.s32.totalorder %s21, 1
        %s167 = scalar_select %p166, %s21, 1
        %p168 = scmp.lt.s32.totalorder %s22, 0
        %s169 = scalar_select %p168, %s22, 0
        %s170 = smul.addr %s169, 3
        %s171 = smul.addr %s167, 3
        %s172 = sadd.s32 %s170, %s171
        %s173 = smul.addr %s172, 2
        %s174 = scalar_lea.vmem %s0, %s173
        %p175 = pneg %p52
        %p176 = pneg %p49
        %p177 = pneg %p73
        %p178 = pneg %p70
        %p179 = pneg %p94
        %p180 = pneg %p91
        %p181 = pneg %p122
        %p182 = pneg %p119
        %s183 = sand.u32 %s109, 1
        %s184 = scalar_lea.sflag [#allocation3], %s183
        %s185 = sand.u32 %s109, 1
        %s186 = smul.addr %s185, 16
        %s187 = scalar_lea.vmem [#allocation2], %s186
        %p188 = scmp.lt.s32.totalorder %s21, 1
        %s189 = scalar_select %p188, %s21, 1
        %p190 = scmp.lt.s32.totalorder %s22, 0
        %s191 = scalar_select %p190, %s22, 0
        %s192 = smul.addr %s191, 3
        %s193 = smul.addr %s189, 3
        %s194 = sadd.s32 %s192, %s193
        %s195 = smul.addr %s194, 2
        %s196 = scalar_lea.vmem %s0, %s195
        %s197 = smul.u32 2, %s22
        %v199 = vld [vmem:[%s196] sm:$0x3f]
        %v200 = vld [vmem:[%s1] sm:$0xf]
        %s201 = scalar_lea.vmem %s1, 4
        %v202 = vld [vmem:[%s201] sm:$0xf]
        %v204 = vcombine.high %v199, %v199
        %v206 = vunpack.c.l.s4 1983009808
        %v207 = vunpack.c.0.s8 %v206
        %v208 = vlaneseq
        %v209 = vshrl.u32 %v208, 7
        %v210 = vsub.s32 %v207, %v209
        %v211 = vrot.slane %v199, %v210
        %v213 = vunpack.c.l.s4 1983009808
        %v214 = vunpack.c.0.s8 %v213
        %v215 = vlaneseq
        %v216 = vshrl.u32 %v215, 7
        %v217 = vsub.s32 %v214, %v216
        %v218 = vrot.slane %v204, %v217
        %v219 = vcombine.high %v211, %v211
        %220 = vrot.lane.b32.xlu0 %v211, 127
        %v221 = vpop.permute.xlu0 %220
        %222 = vrot.lane.b32.xlu0 %v219, 127
        %v223 = vpop.permute.xlu0 %222
        %224 = vrot.lane.b32.xlu0 %v218, 127
        %v225 = vpop.permute.xlu0 %224
        %vm226 = vcmask 1039360
        %v227 = vsel %vm226, %v221, %v223
        %v228 = vsel %vm226, %v223, %v225
        %vm229 = vcmask 31744
        %v231 = vsel %vm229, %v202, 0
        %vm233 = vcmask 1041408
        %v235 = vsel %vm233, %v227, 0
        %v238 = vsel %vm233, %v228, 0
        %240 = vmatprep.subr.bf16.mxu0 %v238
        %241 = vmatpush1.bf16.msra.mxu0 %v235
        %242 = vmatprep.subr.bf16.mxu0 0
        %243 = vmatpush1.bf16.msra.mxu0 0
        %244 = vmatprep.subr.bf16.mxu0 0
        %245 = vmatpush1.bf16.msra.mxu0 0
        %246 = vmatprep.subr.bf16.mxu0 0
        %247 = vmatpush1.bf16.msra.mxu0 0
        %248 = vmatprep.subr.bf16.mxu0 0
        %249 = vmatpush1.bf16.msra.mxu0 0
        %250 = vmatprep.subr.bf16.mxu0 0
        %251 = vmatpush1.bf16.msra.mxu0 0
        %252 = vmatprep.subr.bf16.mxu0 0
        %253 = vmatpush1.bf16.msra.mxu0 0
        %254 = vmatprep.subr.bf16.mxu0 0
        %255 = vmatpush1.bf16.msra.mxu0 0
        %256 = vmatprep.subr.bf16.mxu0 0
        %257 = vmatpush1.bf16.msra.mxu0 0
        %258 = vmatprep.subr.bf16.mxu0 0
        %259 = vmatpush1.bf16.msra.mxu0 0
        %260 = vmatprep.subr.bf16.mxu0 0
        %261 = vmatpush1.bf16.msra.mxu0 0
        %262 = vmatprep.subr.bf16.mxu0 0
        %263 = vmatpush1.bf16.msra.mxu0 0
        %264 = vmatprep.subr.bf16.mxu0 0
        %265 = vmatpush1.bf16.msra.mxu0 0
        %266 = vmatprep.subr.bf16.mxu0 0
        %267 = vmatpush1.bf16.msra.mxu0 0
        %268 = vmatprep.subr.bf16.mxu0 0
        %269 = vmatpush1.bf16.msra.mxu0 0
        %270 = vmatprep.subr.bf16.mxu0 0
        %271 = vmatpush1.bf16.msra.mxu0 0
        %272 = vmatprep.mubr.bf16.mxu0 0
        %273 = vmatmul.mubr.bf16.gmra.mrb[0].mxu0 %v231
        %v274 = vpop.f32.mrb[0].mxu0
        %v275 = vadd.f32 0.0, %v274
        %v276 = vpop.f32.mrb[0].mxu0
        %v277 = vadd.f32 0.0, %v276
        %v278 = vpop.f32.mrb[0].mxu0
        %v279 = vpop.f32.mrb[0].mxu0
        %280 = vdwg.mxu0
        %v282 = vsel %vm229, %v200, 0
        %v285 = vsel %vm233, %v211, 0
        %v288 = vsel %vm233, %v219, 0
        %290 = vmatprep.subr.bf16.mxu0 %v288
        %291 = vmatpush1.bf16.msra.mxu0 %v285
        %292 = vmatprep.subr.bf16.mxu0 0
        %293 = vmatpush1.bf16.msra.mxu0 0
        %294 = vmatprep.subr.bf16.mxu0 0
        %295 = vmatpush1.bf16.msra.mxu0 0
        %296 = vmatprep.subr.bf16.mxu0 0
        %297 = vmatpush1.bf16.msra.mxu0 0
        %298 = vmatprep.subr.bf16.mxu0 0
        %299 = vmatpush1.bf16.msra.mxu0 0
        %300 = vmatprep.subr.bf16.mxu0 0
        %301 = vmatpush1.bf16.msra.mxu0 0
        %302 = vmatprep.subr.bf16.mxu0 0
        %303 = vmatpush1.bf16.msra.mxu0 0
        %304 = vmatprep.subr.bf16.mxu0 0
        %305 = vmatpush1.bf16.msra.mxu0 0
        %306 = vmatprep.subr.bf16.mxu0 0
        %307 = vmatpush1.bf16.msra.mxu0 0
        %308 = vmatprep.subr.bf16.mxu0 0
        %309 = vmatpush1.bf16.msra.mxu0 0
        %310 = vmatprep.subr.bf16.mxu0 0
        %311 = vmatpush1.bf16.msra.mxu0 0
        %312 = vmatprep.subr.bf16.mxu0 0
        %313 = vmatpush1.bf16.msra.mxu0 0
        %314 = vmatprep.subr.bf16.mxu0 0
        %315 = vmatpush1.bf16.msra.mxu0 0
        %316 = vmatprep.subr.bf16.mxu0 0
        %317 = vmatpush1.bf16.msra.mxu0 0
        %318 = vmatprep.subr.bf16.mxu0 0
        %319 = vmatpush1.bf16.msra.mxu0 0
        %320 = vmatprep.subr.bf16.mxu0 0
        %321 = vmatpush1.bf16.msra.mxu0 0
        %322 = vmatprep.mubr.bf16.mxu0 0
        %323 = vmatmul.mubr.bf16.gmra.mrb[0].mxu0 %v282
        %v324 = vpop.f32.mrb[0].mxu0
        %v325 = vadd.f32 %v275, %v324
        %v326 = vpop.f32.mrb[0].mxu0
        %v327 = vadd.f32 %v277, %v326
        %v328 = vpop.f32.mrb[0].mxu0
        %v329 = vpop.f32.mrb[0].mxu0
        %330 = vdwg.mxu0
        %s331 = scalar_lea.vmem %s1, 8
        %v332 = vld [vmem:[%s331] sm:$0xf]
        %333 = vrot.lane.b32.xlu0 %v211, 126
        %v334 = vpop.permute.xlu0 %333
        %335 = vrot.lane.b32.xlu0 %v219, 126
        %v336 = vpop.permute.xlu0 %335
        %337 = vrot.lane.b32.xlu0 %v218, 126
        %v338 = vpop.permute.xlu0 %337
        %vm339 = vcmask 1031168
        %v340 = vsel %vm339, %v334, %v336
        %v341 = vsel %vm339, %v336, %v338
        %v343 = vsel %vm229, %v332, 0
        %v346 = vsel %vm233, %v340, 0
        %v349 = vsel %vm233, %v341, 0
        %351 = vmatprep.subr.bf16.mxu0 %v349
        %352 = vmatpush1.bf16.msra.mxu0 %v346
        %353 = vmatprep.subr.bf16.mxu0 0
        %354 = vmatpush1.bf16.msra.mxu0 0
        %355 = vmatprep.subr.bf16.mxu0 0
        %356 = vmatpush1.bf16.msra.mxu0 0
        %357 = vmatprep.subr.bf16.mxu0 0
        %358 = vmatpush1.bf16.msra.mxu0 0
        %359 = vmatprep.subr.bf16.mxu0 0
        %360 = vmatpush1.bf16.msra.mxu0 0
        %361 = vmatprep.subr.bf16.mxu0 0
        %362 = vmatpush1.bf16.msra.mxu0 0
        %363 = vmatprep.subr.bf16.mxu0 0
        %364 = vmatpush1.bf16.msra.mxu0 0
        %365 = vmatprep.subr.bf16.mxu0 0
        %366 = vmatpush1.bf16.msra.mxu0 0
        %367 = vmatprep.subr.bf16.mxu0 0
        %368 = vmatpush1.bf16.msra.mxu0 0
        %369 = vmatprep.subr.bf16.mxu0 0
        %370 = vmatpush1.bf16.msra.mxu0 0
        %371 = vmatprep.subr.bf16.mxu0 0
        %372 = vmatpush1.bf16.msra.mxu0 0
        %373 = vmatprep.subr.bf16.mxu0 0
        %374 = vmatpush1.bf16.msra.mxu0 0
        %375 = vmatprep.subr.bf16.mxu0 0
        %376 = vmatpush1.bf16.msra.mxu0 0
        %377 = vmatprep.subr.bf16.mxu0 0
        %378 = vmatpush1.bf16.msra.mxu0 0
        %379 = vmatprep.subr.bf16.mxu0 0
        %380 = vmatpush1.bf16.msra.mxu0 0
        %381 = vmatprep.subr.bf16.mxu0 0
        %382 = vmatpush1.bf16.msra.mxu0 0
        %383 = vmatprep.mubr.bf16.mxu0 0
        %384 = vmatmul.mubr.bf16.gmra.mrb[0].mxu0 %v343
        %v385 = vpop.f32.mrb[0].mxu0
        %v386 = vadd.f32 0.0, %v385
        %v387 = vpop.f32.mrb[0].mxu0
        %v388 = vadd.f32 0.0, %v387
        %v389 = vpop.f32.mrb[0].mxu0
        %v390 = vpop.f32.mrb[0].mxu0
        %391 = vdwg.mxu0
        %v392 = vadd.f32 %v325, %v386
        %v393 = vadd.f32 %v327, %v388
        %v394 = vld [vmem:[%s2] sm:$0xff]
        %396 = vset.pattern.permute.xlu0 0
        %397 = vperm.xlu0 %396, %v394
        %v398 = vpop.permute.xlu0 %397
        %v400 = vmul.f32 %v392, %v398
        %v401 = vmul.f32 %v393, %v398
        %s402 = scalar_lea.vmem %s2, 8
        %v403 = vld [vmem:[%s402] sm:$0xff]
        %405 = vset.pattern.permute.xlu0 0
        %406 = vperm.xlu0 %405, %v403
        %v407 = vpop.permute.xlu0 %406
        %v409 = vadd.f32 %v400, %v407
        %v410 = vadd.f32 %v401, %v407
        %v411 = vsub.f32 0.0, %v409
        %v412 = vsub.f32 0.0, %v410
        %v413 = vmul.f32 %v411, 1.442695
        %v414 = vpow.pop %v413
        %v415 = vmul.f32 %v412, 1.442695
        %v416 = vpow.pop %v415
        %v417 = vadd.f32 %v414, 1.0
        %v418 = vadd.f32 %v416, 1.0
        %v419 = vrcp.pop %v417
        %v420 = vrcp.pop %v418
        %v421 = vmul.f32 %v409, %v419
        %v422 = vmul.f32 %v410, %v420
        %423 = vst [vmem:[%s187] sm:$0xff] %v421
        %424 = vst [vmem:[%s187 + $0x8] sm:$0xff] %v422
        %s425 = sand.u32 %s109, 1
        %s426 = scalar_lea.sflag [#allocation3], %s425
        %s427 = sand.u32 %s109, 1
        %s428 = smul.addr %s427, 16
        %s429 = scalar_lea.vmem [#allocation2], %s428
        // Predicated region
        $region33: #{tpu_custom_call.1} parent=31 // pred_check
          %p430 = pneg %p119
        $region34: #{tpu_custom_call.1} parent=31 // pred_check_branch
          %432 = sbr.rel (%p430) target = $region36
        $region35: #{tpu_custom_call.1} parent=31 // pred_region
          %s433 = smul.u32 2, %s22
          %s435 = ssub.s32 256, 256
          %436 = vsyncadd %s426, %s435
          %s437 = smul.addr %s21, 2
          %s438 = sadd.s32 %s433, %s437
          %s439 = smul.addr %s438, 128
          %s440 = scalar_lea.hbm %s3, %s439
          %s442 = sshll.u32 %s429, 4
          %s443 = int_to_ptr.vmem [resolvable:$true] %s442
          %445 = dma.vmem_to_hbm [thread:$0]  %s443, 256, %s440, %s426
        $region36: #{tpu_custom_call.1} parent=31 // pred_fallthru
          _
      $region32: #{tpu_custom_call.1} parent=5 // pred_fallthru
        _
      %p446 = scmp.le.s32.totalorder 2, %s12
      // Predicated region
      $region37: #{tpu_custom_call.1} parent=5 // pred_check
        %p447 = pneg %p446
      $region38: #{tpu_custom_call.1} parent=5 // pred_check_branch
        %449 = sbr.rel (%p447) target = $region40
      $region39: #{tpu_custom_call.1} parent=5 // pred_region
        %s450 = ssub.s32 %s12, 2
        // Predicated region
        $region41: #{tpu_custom_call.1} parent=39 // pred_check
          %p451 = pneg %p125
        $region42: #{tpu_custom_call.1} parent=39 // pred_check_branch
          %453 = sbr.rel (%p451) target = $region44
        $region43: #{tpu_custom_call.1} parent=39 // pred_region
          %s454 = sand.u32 %s110, 1
          %s455 = scalar_lea.sflag [#allocation3], %s454
          %s456 = sand.u32 %s110, 1
          %s457 = smul.addr %s456, 16
          %s458 = scalar_lea.vmem [#allocation2], %s457
          %459 = dma.done %s455, 256
        $region44: #{tpu_custom_call.1} parent=39 // pred_fallthru
          _
      $region40: #{tpu_custom_call.1} parent=5 // pred_fallthru
        _
    $region6: #{tpu_custom_call.1} parent=1 // loop_footer
      %s16 = sadd.s32 1, %s12
    $region7: #{tpu_custom_call.1} parent=1 // loop_footer_branch
      %11 = sbr.rel target = $region3
    $region8: #{tpu_custom_call.1} parent=1 // loop_exit
      _
    %460 = vsyncpa [#allocation3], 1
    %s461 = scalar_lea.sflag [#allocation3], 1
    %462 = vsyncpa %s461, 1

</llo_original>
